<compile_context>
chip_gen: v5e
topology: v5e:2x2
jax: 0.10.0
libtpu: 0.0.40
codegen_flags: <defaults>
</compile_context>

<pallas_src>
import jax
import jax.numpy as jnp
import numpy as np
from jax.experimental import pallas as pl
from jax.experimental.pallas import tpu as pltpu

# ---- small, forward-consistent shapes ---------------------------------------
B = 2            # batch
L = 8            # sequence length
VOCAB = 100      # vocab_size (synthetic)
E = 32           # embedding_dim
F = 32           # num_filters per conv
KSIZES = (2, 3, 4)
NF = F * len(KSIZES)     # concatenated conv channels = 96
NFP = 128                # NF zero-padded to a full lane width
NL = 4                   # num_labels
KW = max(KSIZES)         # common window width = 4  -> contraction 4*E = 128
PAD_L, PAD_R = 1, 2      # max torch 'same' left/right pad over k = 2,3,4
HEADP = 128              # packed head lanes (0:NL logits, NL score, rest 0)
LP = L + KW - 1          # padded sequence length = 11

assert KW * E == 128 and NFP == 128 and LP == L + PAD_L + PAD_R


def _left_pad(k):
    # torch Conv1d padding='same': total = k-1, left = total // 2
    return (k - 1) // 2


# ---- Pallas kernel -----------------------------------------------------------
def gtscnn_kernel(ids_ref, emb_ref, wc_ref, bconv_ref, wh_ref, bh_ref,
                  head_ref, embp_scr):
    # ids_ref   : SMEM (B, L) int32
    # emb_ref   : VMEM (VOCAB, 1, E) f32   (leading-dim dynamic-indexable table)
    # wc_ref    : VMEM (KW*E, NFP) f32     (fused conv weight, zero-embedded taps)
    # bconv_ref : VMEM (1, NFP) f32
    # wh_ref    : VMEM (NFP, HEADP) f32    (fused [triple | score | 0] head weight)
    # bh_ref    : VMEM (1, HEADP) f32
    # head_ref  : VMEM (B*L*L, HEADP) f32  (lane-dense packed output)
    # embp_scr  : VMEM (B, LP, E) f32      (padded-embedding scratch)

    # --- embedding gather + torch-'same' zero padding (fused into the kernel) --
    embp_scr[...] = jnp.zeros_like(embp_scr)
    for b in range(B):                       # static, fully-unrolled 16-row gather
        for i in range(L):
            tok = ids_ref[b, i]                                   # SMEM scalar
            embp_scr[b, PAD_L + i:PAD_L + i + 1, :] = emb_ref[tok]  # (1, E)

    embp = embp_scr[...]                     # (B, LP, E)
    wc = wc_ref[...]                         # (KW*E, NFP)

    # --- all three 'same' convs: sum of KW shifted (B*L,E)@(E,NFP) matmuls -----
    acc = jnp.zeros((B * L, NFP), jnp.float32)
    for j in range(KW):
        x_j = embp[:, j:j + L, :].reshape(B * L, E)
        acc = acc + jnp.dot(x_j, wc[j * E:(j + 1) * E, :],
                            preferred_element_type=jnp.float32)
    out = acc + bconv_ref[...]               # (B*L, NFP)

    # --- word-pair outer feature: wpf[b,i,j,:] = out[b,i,:] * out[b,j,:] -------
    o3 = out.reshape(B, L, NFP)
    wpf = (o3[:, :, None, :] * o3[:, None, :, :]).reshape(B * L * L, NFP)

    # --- both heads in one matmul against the fused weight + fused bias --------
    head_ref[...] = jnp.dot(wpf, wh_ref[...],
                            preferred_element_type=jnp.float32) + bh_ref[...]


# ---- one-time fused-parameter construction (NOT in the per-call path) --------
def build_fused_params(params):
    # Embedding table reshaped so the kernel can dynamic-index its leading dim.
    emb3 = params["embedding"].reshape(VOCAB, 1, E)

    # Fused im2col conv weight (KW*E, NFP): tap t of conv k lands at window
    # offset j = t + PAD_L - left_pad(k); output columns NF:NFP stay zero.
    wc = jnp.zeros((KW * E, NFP), jnp.float32)
    for kidx, (k, wkey) in enumerate(zip(KSIZES, ("w2", "w3", "w4"))):
        w = params[wkey]                                  # (k, E, F)
        lp = _left_pad(k)
        for t in range(k):
            j = t + PAD_L - lp
            wc = wc.at[j * E:(j + 1) * E, kidx * F:(kidx + 1) * F].set(w[t])
    bconv = jnp.zeros((1, NFP), jnp.float32).at[:, :NF].set(params["bconv"])

    # Fused head weight/bias: cols 0:NL = triple_linear, col NL = score_linear.
    wh = (jnp.zeros((NFP, HEADP), jnp.float32)
          .at[:NF, :NL].set(params["wt"])
          .at[:NF, NL].set(params["ws"][:, 0]))
    bh = (jnp.zeros((1, HEADP), jnp.float32)
          .at[:, :NL].set(params["bt"])
          .at[:, NL].set(params["bs"][0, 0]))
    return dict(emb3=emb3, wc=wc, bconv=bconv, wh=wh, bh=bh)


# ---- jitted forward (single pallas_call, no per-call weight rebuilds) ---------
@jax.jit
def gtscnn_forward(input_ids, emb3, wc, bconv, wh, bh):
    smem_spec = pl.BlockSpec(memory_space=pltpu.MemorySpace.SMEM)
    vmem_spec = lambda: pl.BlockSpec(memory_space=pltpu.MemorySpace.VMEM)
    packed = pl.pallas_call(
        gtscnn_kernel,
        out_shape=jax.ShapeDtypeStruct((B * L * L, HEADP), jnp.float32),
        in_specs=[smem_spec, vmem_spec(), vmem_spec(), vmem_spec(),
                  vmem_spec(), vmem_spec()],
        out_specs=vmem_spec(),
        scratch_shapes=[pltpu.VMEM((B, LP, E), jnp.float32)],
    )(input_ids, emb3, wc, bconv, wh, bh)
    head = packed.reshape(B, L, L, HEADP)
    logits = head[..., :NL]                                       # (B, L, L, NL)
    scores = head[..., NL]                                        # (B, L, L)
    return logits, scores


# ---- pure-JAX reference (torch-equivalent forward, for correctness check) ----
def ref_forward(input_ids, params):
    emb = params["embedding"][input_ids]
    embp = jnp.pad(emb, ((0, 0), (PAD_L, PAD_R), (0, 0)))
    outs = []
    for k, w in zip(KSIZES, (params["w2"], params["w3"], params["w4"])):
        lp = _left_pad(k)
        acc = jnp.zeros((B, L, F), jnp.float32)
        for t in range(k):
            s = PAD_L + t - lp
            acc = acc + jnp.einsum("ble,ef->blf", embp[:, s:s + L, :], w[t],
                                   precision="highest")
        outs.append(acc)
    out = jnp.concatenate(outs, axis=-1) + params["bconv"]        # (B, L, 3F)
    wpf = out[:, :, None, :] * out[:, None, :, :]                 # (B, L, L, 3F)
    logits = jnp.einsum("bijk,kn->bijn", wpf, params["wt"],
                        precision="highest") + params["bt"][0]
    scores = jnp.einsum("bijk,kn->bijn", wpf, params["ws"],
                        precision="highest")[..., 0] + params["bs"][0, 0]
    return logits, scores


def init_params(key):
    ks = jax.random.split(key, 10)
    s = 0.05
    return {
        "embedding": jax.random.normal(ks[0], (VOCAB, E), jnp.float32) * s,
        # conv weights stored as (k, E, F)  (== torch (F, E, k) transposed)
        "w2": jax.random.normal(ks[1], (2, E, F), jnp.float32) * s,
        "w3": jax.random.normal(ks[2], (3, E, F), jnp.float32) * s,
        "w4": jax.random.normal(ks[3], (4, E, F), jnp.float32) * s,
        "bconv": jax.random.normal(ks[4], (1, NF), jnp.float32) * s,
        "wt": jax.random.normal(ks[5], (NF, NL), jnp.float32) * s,   # triple_linear.weight.T
        "bt": jax.random.normal(ks[6], (1, NL), jnp.float32) * s,
        "ws": jax.random.normal(ks[7], (NF, 1), jnp.float32) * s,    # score_linear.weight.T
        "bs": jax.random.normal(ks[8], (1, 1), jnp.float32) * s,
    }


if __name__ == "__main__":
    key = jax.random.PRNGKey(0)
    k_ids, k_par = jax.random.split(key)
    input_ids = jax.random.randint(k_ids, (B, L), 0, VOCAB, dtype=jnp.int32)
    params = init_params(k_par)

    # Fused operands built ONCE (outside the per-call path).
    fused = build_fused_params(params)
    fused = jax.tree_util.tree_map(jax.block_until_ready, fused)

    logits, scores = gtscnn_forward(input_ids, fused["emb3"], fused["wc"],
                                    fused["bconv"], fused["wh"], fused["bh"])
    jax.block_until_ready((logits, scores))

    ref_logits, ref_scores = ref_forward(input_ids, params)
    np.testing.assert_allclose(np.asarray(logits), np.asarray(ref_logits),
                               rtol=2e-3, atol=2e-5)
    np.testing.assert_allclose(np.asarray(scores), np.asarray(ref_scores),
                               rtol=2e-3, atol=2e-5)

    # TODO(synk): loss_compute (masked CE + MSE) and Dropout are training-only /
    # identity in the eval forward; not implemented in the kernel.
    print("KERNEL_OK")
</pallas_src>

<mosaic_0001>
module attributes {stable_mosaic.version = 11 : i64} {
  func.func @gtscnn_kernel(%arg0: memref<2x8xi32, #tpu.memory_space<smem>>, %arg1: memref<100x1x32xf32, #tpu.memory_space<vmem>>, %arg2: memref<128x128xf32, #tpu.memory_space<vmem>>, %arg3: memref<1x128xf32, #tpu.memory_space<vmem>>, %arg4: memref<128x128xf32, #tpu.memory_space<vmem>>, %arg5: memref<1x128xf32, #tpu.memory_space<vmem>>, %arg6: memref<128x128xf32, #tpu.memory_space<vmem>>, %arg7: memref<2x11x32xf32, #tpu.memory_space<vmem>>) attributes {dimension_semantics = [], scalar_prefetch = 0 : i64, scratch_operands = 1 : i64, tpu.core_type = #tpu.core_type<tc>} {
    %cst = arith.constant 0.000000e+00 : f32
    %0 = vector.broadcast %cst : f32 to vector<2x11x32xf32>
    %c0 = arith.constant 0 : index
    %c0_0 = arith.constant 0 : index
    %c0_1 = arith.constant 0 : index
    %1 = vector.load %arg7[%c0, %c0_0, %c0_1] : memref<2x11x32xf32, #tpu.memory_space<vmem>>, vector<2x11x32xf32>
    tpu.vector_store %arg7[%c0, %c0_0, %c0_1], %0 {strides = array<i32>} : memref<2x11x32xf32, #tpu.memory_space<vmem>>, vector<2x11x32xf32>,
    %c0_2 = arith.constant 0 : index
    %c0_3 = arith.constant 0 : index
    %2 = memref.load %arg0[%c0_2, %c0_3] : memref<2x8xi32, #tpu.memory_space<smem>>
    %3 = arith.index_cast %2 : i32 to index
    %c0_4 = arith.constant 0 : index
    %c0_5 = arith.constant 0 : index
    %4 = vector.load %arg1[%3, %c0_4, %c0_5] : memref<100x1x32xf32, #tpu.memory_space<vmem>>, vector<1x1x32xf32>
    %5 = vector.shape_cast %4 : vector<1x1x32xf32> to vector<1x32xf32>
    %c0_6 = arith.constant 0 : index
    %c1 = arith.constant 1 : index
    %c0_7 = arith.constant 0 : index
    %6 = vector.load %arg7[%c0_6, %c1, %c0_7] : memref<2x11x32xf32, #tpu.memory_space<vmem>>, vector<1x1x32xf32>
    %7 = vector.shape_cast %6 : vector<1x1x32xf32> to vector<1x32xf32>
    %8 = vector.shape_cast %5 : vector<1x32xf32> to vector<1x1x32xf32>
    tpu.vector_store %arg7[%c0_6, %c1, %c0_7], %8 {strides = array<i32>} : memref<2x11x32xf32, #tpu.memory_space<vmem>>, vector<1x1x32xf32>,
    %c0_8 = arith.constant 0 : index
    %c1_9 = arith.constant 1 : index
    %9 = memref.load %arg0[%c0_8, %c1_9] : memref<2x8xi32, #tpu.memory_space<smem>>
    %10 = arith.index_cast %9 : i32 to index
    %c0_10 = arith.constant 0 : index
    %c0_11 = arith.constant 0 : index
    %11 = vector.load %arg1[%10, %c0_10, %c0_11] : memref<100x1x32xf32, #tpu.memory_space<vmem>>, vector<1x1x32xf32>
    %12 = vector.shape_cast %11 : vector<1x1x32xf32> to vector<1x32xf32>
    %c0_12 = arith.constant 0 : index
    %c2 = arith.constant 2 : index
    %c0_13 = arith.constant 0 : index
    %13 = vector.load %arg7[%c0_12, %c2, %c0_13] : memref<2x11x32xf32, #tpu.memory_space<vmem>>, vector<1x1x32xf32>
    %14 = vector.shape_cast %13 : vector<1x1x32xf32> to vector<1x32xf32>
    %15 = vector.shape_cast %12 : vector<1x32xf32> to vector<1x1x32xf32>
    tpu.vector_store %arg7[%c0_12, %c2, %c0_13], %15 {strides = array<i32>} : memref<2x11x32xf32, #tpu.memory_space<vmem>>, vector<1x1x32xf32>,
    %c0_14 = arith.constant 0 : index
    %c2_15 = arith.constant 2 : index
    %16 = memref.load %arg0[%c0_14, %c2_15] : memref<2x8xi32, #tpu.memory_space<smem>>
    %17 = arith.index_cast %16 : i32 to index
    %c0_16 = arith.constant 0 : index
    %c0_17 = arith.constant 0 : index
    %18 = vector.load %arg1[%17, %c0_16, %c0_17] : memref<100x1x32xf32, #tpu.memory_space<vmem>>, vector<1x1x32xf32>
    %19 = vector.shape_cast %18 : vector<1x1x32xf32> to vector<1x32xf32>
    %c0_18 = arith.constant 0 : index
    %c3 = arith.constant 3 : index
    %c0_19 = arith.constant 0 : index
    %20 = vector.load %arg7[%c0_18, %c3, %c0_19] : memref<2x11x32xf32, #tpu.memory_space<vmem>>, vector<1x1x32xf32>
    %21 = vector.shape_cast %20 : vector<1x1x32xf32> to vector<1x32xf32>
    %22 = vector.shape_cast %19 : vector<1x32xf32> to vector<1x1x32xf32>
    tpu.vector_store %arg7[%c0_18, %c3, %c0_19], %22 {strides = array<i32>} : memref<2x11x32xf32, #tpu.memory_space<vmem>>, vector<1x1x32xf32>,
    %c0_20 = arith.constant 0 : index
    %c3_21 = arith.constant 3 : index
    %23 = memref.load %arg0[%c0_20, %c3_21] : memref<2x8xi32, #tpu.memory_space<smem>>
    %24 = arith.index_cast %23 : i32 to index
    %c0_22 = arith.constant 0 : index
    %c0_23 = arith.constant 0 : index
    %25 = vector.load %arg1[%24, %c0_22, %c0_23] : memref<100x1x32xf32, #tpu.memory_space<vmem>>, vector<1x1x32xf32>
    %26 = vector.shape_cast %25 : vector<1x1x32xf32> to vector<1x32xf32>
    %c0_24 = arith.constant 0 : index
    %c4 = arith.constant 4 : index
    %c0_25 = arith.constant 0 : index
    %27 = vector.load %arg7[%c0_24, %c4, %c0_25] : memref<2x11x32xf32, #tpu.memory_space<vmem>>, vector<1x1x32xf32>
    %28 = vector.shape_cast %27 : vector<1x1x32xf32> to vector<1x32xf32>
    %29 = vector.shape_cast %26 : vector<1x32xf32> to vector<1x1x32xf32>
    tpu.vector_store %arg7[%c0_24, %c4, %c0_25], %29 {strides = array<i32>} : memref<2x11x32xf32, #tpu.memory_space<vmem>>, vector<1x1x32xf32>,
    %c0_26 = arith.constant 0 : index
    %c4_27 = arith.constant 4 : index
    %30 = memref.load %arg0[%c0_26, %c4_27] : memref<2x8xi32, #tpu.memory_space<smem>>
    %31 = arith.index_cast %30 : i32 to index
    %c0_28 = arith.constant 0 : index
    %c0_29 = arith.constant 0 : index
    %32 = vector.load %arg1[%31, %c0_28, %c0_29] : memref<100x1x32xf32, #tpu.memory_space<vmem>>, vector<1x1x32xf32>
    %33 = vector.shape_cast %32 : vector<1x1x32xf32> to vector<1x32xf32>
    %c0_30 = arith.constant 0 : index
    %c5 = arith.constant 5 : index
    %c0_31 = arith.constant 0 : index
    %34 = vector.load %arg7[%c0_30, %c5, %c0_31] : memref<2x11x32xf32, #tpu.memory_space<vmem>>, vector<1x1x32xf32>
    %35 = vector.shape_cast %34 : vector<1x1x32xf32> to vector<1x32xf32>
    %36 = vector.shape_cast %33 : vector<1x32xf32> to vector<1x1x32xf32>
    tpu.vector_store %arg7[%c0_30, %c5, %c0_31], %36 {strides = array<i32>} : memref<2x11x32xf32, #tpu.memory_space<vmem>>, vector<1x1x32xf32>,
    %c0_32 = arith.constant 0 : index
    %c5_33 = arith.constant 5 : index
    %37 = memref.load %arg0[%c0_32, %c5_33] : memref<2x8xi32, #tpu.memory_space<smem>>
    %38 = arith.index_cast %37 : i32 to index
    %c0_34 = arith.constant 0 : index
    %c0_35 = arith.constant 0 : index
    %39 = vector.load %arg1[%38, %c0_34, %c0_35] : memref<100x1x32xf32, #tpu.memory_space<vmem>>, vector<1x1x32xf32>
    %40 = vector.shape_cast %39 : vector<1x1x32xf32> to vector<1x32xf32>
    %c0_36 = arith.constant 0 : index
    %c6 = arith.constant 6 : index
    %c0_37 = arith.constant 0 : index
    %41 = vector.load %arg7[%c0_36, %c6, %c0_37] : memref<2x11x32xf32, #tpu.memory_space<vmem>>, vector<1x1x32xf32>
    %42 = vector.shape_cast %41 : vector<1x1x32xf32> to vector<1x32xf32>
    %43 = vector.shape_cast %40 : vector<1x32xf32> to vector<1x1x32xf32>
    tpu.vector_store %arg7[%c0_36, %c6, %c0_37], %43 {strides = array<i32>} : memref<2x11x32xf32, #tpu.memory_space<vmem>>, vector<1x1x32xf32>,
    %c0_38 = arith.constant 0 : index
    %c6_39 = arith.constant 6 : index
    %44 = memref.load %arg0[%c0_38, %c6_39] : memref<2x8xi32, #tpu.memory_space<smem>>
    %45 = arith.index_cast %44 : i32 to index
    %c0_40 = arith.constant 0 : index
    %c0_41 = arith.constant 0 : index
    %46 = vector.load %arg1[%45, %c0_40, %c0_41] : memref<100x1x32xf32, #tpu.memory_space<vmem>>, vector<1x1x32xf32>
    %47 = vector.shape_cast %46 : vector<1x1x32xf32> to vector<1x32xf32>
    %c0_42 = arith.constant 0 : index
    %c7 = arith.constant 7 : index
    %c0_43 = arith.constant 0 : index
    %48 = vector.load %arg7[%c0_42, %c7, %c0_43] : memref<2x11x32xf32, #tpu.memory_space<vmem>>, vector<1x1x32xf32>
    %49 = vector.shape_cast %48 : vector<1x1x32xf32> to vector<1x32xf32>
    %50 = vector.shape_cast %47 : vector<1x32xf32> to vector<1x1x32xf32>
    tpu.vector_store %arg7[%c0_42, %c7, %c0_43], %50 {strides = array<i32>} : memref<2x11x32xf32, #tpu.memory_space<vmem>>, vector<1x1x32xf32>,
    %c0_44 = arith.constant 0 : index
    %c7_45 = arith.constant 7 : index
    %51 = memref.load %arg0[%c0_44, %c7_45] : memref<2x8xi32, #tpu.memory_space<smem>>
    %52 = arith.index_cast %51 : i32 to index
    %c0_46 = arith.constant 0 : index
    %c0_47 = arith.constant 0 : index
    %53 = vector.load %arg1[%52, %c0_46, %c0_47] : memref<100x1x32xf32, #tpu.memory_space<vmem>>, vector<1x1x32xf32>
    %54 = vector.shape_cast %53 : vector<1x1x32xf32> to vector<1x32xf32>
    %c0_48 = arith.constant 0 : index
    %c8 = arith.constant 8 : index
    %c0_49 = arith.constant 0 : index
    %55 = vector.load %arg7[%c0_48, %c8, %c0_49] : memref<2x11x32xf32, #tpu.memory_space<vmem>>, vector<1x1x32xf32>
    %56 = vector.shape_cast %55 : vector<1x1x32xf32> to vector<1x32xf32>
    %57 = vector.shape_cast %54 : vector<1x32xf32> to vector<1x1x32xf32>
    tpu.vector_store %arg7[%c0_48, %c8, %c0_49], %57 {strides = array<i32>} : memref<2x11x32xf32, #tpu.memory_space<vmem>>, vector<1x1x32xf32>,
    %c1_50 = arith.constant 1 : index
    %c0_51 = arith.constant 0 : index
    %58 = memref.load %arg0[%c1_50, %c0_51] : memref<2x8xi32, #tpu.memory_space<smem>>
    %59 = arith.index_cast %58 : i32 to index
    %c0_52 = arith.constant 0 : index
    %c0_53 = arith.constant 0 : index
    %60 = vector.load %arg1[%59, %c0_52, %c0_53] : memref<100x1x32xf32, #tpu.memory_space<vmem>>, vector<1x1x32xf32>
    %61 = vector.shape_cast %60 : vector<1x1x32xf32> to vector<1x32xf32>
    %c1_54 = arith.constant 1 : index
    %c1_55 = arith.constant 1 : index
    %c0_56 = arith.constant 0 : index
    %62 = vector.load %arg7[%c1_54, %c1_55, %c0_56] : memref<2x11x32xf32, #tpu.memory_space<vmem>>, vector<1x1x32xf32>
    %63 = vector.shape_cast %62 : vector<1x1x32xf32> to vector<1x32xf32>
    %64 = vector.shape_cast %61 : vector<1x32xf32> to vector<1x1x32xf32>
    tpu.vector_store %arg7[%c1_54, %c1_55, %c0_56], %64 {strides = array<i32>} : memref<2x11x32xf32, #tpu.memory_space<vmem>>, vector<1x1x32xf32>,
    %c1_57 = arith.constant 1 : index
    %c1_58 = arith.constant 1 : index
    %65 = memref.load %arg0[%c1_57, %c1_58] : memref<2x8xi32, #tpu.memory_space<smem>>
    %66 = arith.index_cast %65 : i32 to index
    %c0_59 = arith.constant 0 : index
    %c0_60 = arith.constant 0 : index
    %67 = vector.load %arg1[%66, %c0_59, %c0_60] : memref<100x1x32xf32, #tpu.memory_space<vmem>>, vector<1x1x32xf32>
    %68 = vector.shape_cast %67 : vector<1x1x32xf32> to vector<1x32xf32>
    %c1_61 = arith.constant 1 : index
    %c2_62 = arith.constant 2 : index
    %c0_63 = arith.constant 0 : index
    %69 = vector.load %arg7[%c1_61, %c2_62, %c0_63] : memref<2x11x32xf32, #tpu.memory_space<vmem>>, vector<1x1x32xf32>
    %70 = vector.shape_cast %69 : vector<1x1x32xf32> to vector<1x32xf32>
    %71 = vector.shape_cast %68 : vector<1x32xf32> to vector<1x1x32xf32>
    tpu.vector_store %arg7[%c1_61, %c2_62, %c0_63], %71 {strides = array<i32>} : memref<2x11x32xf32, #tpu.memory_space<vmem>>, vector<1x1x32xf32>,
    %c1_64 = arith.constant 1 : index
    %c2_65 = arith.constant 2 : index
    %72 = memref.load %arg0[%c1_64, %c2_65] : memref<2x8xi32, #tpu.memory_space<smem>>
    %73 = arith.index_cast %72 : i32 to index
    %c0_66 = arith.constant 0 : index
    %c0_67 = arith.constant 0 : index
    %74 = vector.load %arg1[%73, %c0_66, %c0_67] : memref<100x1x32xf32, #tpu.memory_space<vmem>>, vector<1x1x32xf32>
    %75 = vector.shape_cast %74 : vector<1x1x32xf32> to vector<1x32xf32>
    %c1_68 = arith.constant 1 : index
    %c3_69 = arith.constant 3 : index
    %c0_70 = arith.constant 0 : index
    %76 = vector.load %arg7[%c1_68, %c3_69, %c0_70] : memref<2x11x32xf32, #tpu.memory_space<vmem>>, vector<1x1x32xf32>
    %77 = vector.shape_cast %76 : vector<1x1x32xf32> to vector<1x32xf32>
    %78 = vector.shape_cast %75 : vector<1x32xf32> to vector<1x1x32xf32>
    tpu.vector_store %arg7[%c1_68, %c3_69, %c0_70], %78 {strides = array<i32>} : memref<2x11x32xf32, #tpu.memory_space<vmem>>, vector<1x1x32xf32>,
    %c1_71 = arith.constant 1 : index
    %c3_72 = arith.constant 3 : index
    %79 = memref.load %arg0[%c1_71, %c3_72] : memref<2x8xi32, #tpu.memory_space<smem>>
    %80 = arith.index_cast %79 : i32 to index
    %c0_73 = arith.constant 0 : index
    %c0_74 = arith.constant 0 : index
    %81 = vector.load %arg1[%80, %c0_73, %c0_74] : memref<100x1x32xf32, #tpu.memory_space<vmem>>, vector<1x1x32xf32>
    %82 = vector.shape_cast %81 : vector<1x1x32xf32> to vector<1x32xf32>
    %c1_75 = arith.constant 1 : index
    %c4_76 = arith.constant 4 : index
    %c0_77 = arith.constant 0 : index
    %83 = vector.load %arg7[%c1_75, %c4_76, %c0_77] : memref<2x11x32xf32, #tpu.memory_space<vmem>>, vector<1x1x32xf32>
    %84 = vector.shape_cast %83 : vector<1x1x32xf32> to vector<1x32xf32>
    %85 = vector.shape_cast %82 : vector<1x32xf32> to vector<1x1x32xf32>
    tpu.vector_store %arg7[%c1_75, %c4_76, %c0_77], %85 {strides = array<i32>} : memref<2x11x32xf32, #tpu.memory_space<vmem>>, vector<1x1x32xf32>,
    %c1_78 = arith.constant 1 : index
    %c4_79 = arith.constant 4 : index
    %86 = memref.load %arg0[%c1_78, %c4_79] : memref<2x8xi32, #tpu.memory_space<smem>>
    %87 = arith.index_cast %86 : i32 to index
    %c0_80 = arith.constant 0 : index
    %c0_81 = arith.constant 0 : index
    %88 = vector.load %arg1[%87, %c0_80, %c0_81] : memref<100x1x32xf32, #tpu.memory_space<vmem>>, vector<1x1x32xf32>
    %89 = vector.shape_cast %88 : vector<1x1x32xf32> to vector<1x32xf32>
    %c1_82 = arith.constant 1 : index
    %c5_83 = arith.constant 5 : index
    %c0_84 = arith.constant 0 : index
    %90 = vector.load %arg7[%c1_82, %c5_83, %c0_84] : memref<2x11x32xf32, #tpu.memory_space<vmem>>, vector<1x1x32xf32>
    %91 = vector.shape_cast %90 : vector<1x1x32xf32> to vector<1x32xf32>
    %92 = vector.shape_cast %89 : vector<1x32xf32> to vector<1x1x32xf32>
    tpu.vector_store %arg7[%c1_82, %c5_83, %c0_84], %92 {strides = array<i32>} : memref<2x11x32xf32, #tpu.memory_space<vmem>>, vector<1x1x32xf32>,
    %c1_85 = arith.constant 1 : index
    %c5_86 = arith.constant 5 : index
    %93 = memref.load %arg0[%c1_85, %c5_86] : memref<2x8xi32, #tpu.memory_space<smem>>
    %94 = arith.index_cast %93 : i32 to index
    %c0_87 = arith.constant 0 : index
    %c0_88 = arith.constant 0 : index
    %95 = vector.load %arg1[%94, %c0_87, %c0_88] : memref<100x1x32xf32, #tpu.memory_space<vmem>>, vector<1x1x32xf32>
    %96 = vector.shape_cast %95 : vector<1x1x32xf32> to vector<1x32xf32>
    %c1_89 = arith.constant 1 : index
    %c6_90 = arith.constant 6 : index
    %c0_91 = arith.constant 0 : index
    %97 = vector.load %arg7[%c1_89, %c6_90, %c0_91] : memref<2x11x32xf32, #tpu.memory_space<vmem>>, vector<1x1x32xf32>
    %98 = vector.shape_cast %97 : vector<1x1x32xf32> to vector<1x32xf32>
    %99 = vector.shape_cast %96 : vector<1x32xf32> to vector<1x1x32xf32>
    tpu.vector_store %arg7[%c1_89, %c6_90, %c0_91], %99 {strides = array<i32>} : memref<2x11x32xf32, #tpu.memory_space<vmem>>, vector<1x1x32xf32>,
    %c1_92 = arith.constant 1 : index
    %c6_93 = arith.constant 6 : index
    %100 = memref.load %arg0[%c1_92, %c6_93] : memref<2x8xi32, #tpu.memory_space<smem>>
    %101 = arith.index_cast %100 : i32 to index
    %c0_94 = arith.constant 0 : index
    %c0_95 = arith.constant 0 : index
    %102 = vector.load %arg1[%101, %c0_94, %c0_95] : memref<100x1x32xf32, #tpu.memory_space<vmem>>, vector<1x1x32xf32>
    %103 = vector.shape_cast %102 : vector<1x1x32xf32> to vector<1x32xf32>
    %c1_96 = arith.constant 1 : index
    %c7_97 = arith.constant 7 : index
    %c0_98 = arith.constant 0 : index
    %104 = vector.load %arg7[%c1_96, %c7_97, %c0_98] : memref<2x11x32xf32, #tpu.memory_space<vmem>>, vector<1x1x32xf32>
    %105 = vector.shape_cast %104 : vector<1x1x32xf32> to vector<1x32xf32>
    %106 = vector.shape_cast %103 : vector<1x32xf32> to vector<1x1x32xf32>
    tpu.vector_store %arg7[%c1_96, %c7_97, %c0_98], %106 {strides = array<i32>} : memref<2x11x32xf32, #tpu.memory_space<vmem>>, vector<1x1x32xf32>,
    %c1_99 = arith.constant 1 : index
    %c7_100 = arith.constant 7 : index
    %107 = memref.load %arg0[%c1_99, %c7_100] : memref<2x8xi32, #tpu.memory_space<smem>>
    %108 = arith.index_cast %107 : i32 to index
    %c0_101 = arith.constant 0 : index
    %c0_102 = arith.constant 0 : index
    %109 = vector.load %arg1[%108, %c0_101, %c0_102] : memref<100x1x32xf32, #tpu.memory_space<vmem>>, vector<1x1x32xf32>
    %110 = vector.shape_cast %109 : vector<1x1x32xf32> to vector<1x32xf32>
    %c1_103 = arith.constant 1 : index
    %c8_104 = arith.constant 8 : index
    %c0_105 = arith.constant 0 : index
    %111 = vector.load %arg7[%c1_103, %c8_104, %c0_105] : memref<2x11x32xf32, #tpu.memory_space<vmem>>, vector<1x1x32xf32>
    %112 = vector.shape_cast %111 : vector<1x1x32xf32> to vector<1x32xf32>
    %113 = vector.shape_cast %110 : vector<1x32xf32> to vector<1x1x32xf32>
    tpu.vector_store %arg7[%c1_103, %c8_104, %c0_105], %113 {strides = array<i32>} : memref<2x11x32xf32, #tpu.memory_space<vmem>>, vector<1x1x32xf32>,
    %c0_106 = arith.constant 0 : index
    %c0_107 = arith.constant 0 : index
    %c0_108 = arith.constant 0 : index
    %114 = vector.load %arg7[%c0_106, %c0_107, %c0_108] : memref<2x11x32xf32, #tpu.memory_space<vmem>>, vector<2x11x32xf32>
    %c0_109 = arith.constant 0 : index
    %c0_110 = arith.constant 0 : index
    %115 = vector.load %arg2[%c0_109, %c0_110] : memref<128x128xf32, #tpu.memory_space<vmem>>, vector<128x128xf32>
    %cst_111 = arith.constant 0.000000e+00 : f32
    %116 = vector.broadcast %cst_111 : f32 to vector<16x128xf32>
    %117 = vector.extract_strided_slice %114 {offsets = [0, 0, 0], sizes = [2, 8, 32], strides = [1, 1, 1]} : vector<2x11x32xf32> to vector<2x8x32xf32>
    %118 = vector.shape_cast %117 : vector<2x8x32xf32> to vector<16x32xf32>
    %119 = vector.extract_strided_slice %115 {offsets = [0, 0], sizes = [32, 128], strides = [1, 1]} : vector<128x128xf32> to vector<32x128xf32>
    %cst_112 = arith.constant dense<0.000000e+00> : vector<16x128xf32>
    %120 = tpu.matmul %118, %119, %cst_112 {dimension_numbers = #tpu.dot_dimension_numbers<[1], [0], [0], [1], [0, 0, 1, 1], [], []>} : vector<16x32xf32>, vector<32x128xf32>, vector<16x128xf32> -> vector<16x128xf32>
    %121 = arith.addf %116, %120 : vector<16x128xf32>
    %122 = vector.extract_strided_slice %114 {offsets = [0, 1, 0], sizes = [2, 8, 32], strides = [1, 1, 1]} : vector<2x11x32xf32> to vector<2x8x32xf32>
    %123 = vector.shape_cast %122 : vector<2x8x32xf32> to vector<16x32xf32>
    %124 = vector.extract_strided_slice %115 {offsets = [32, 0], sizes = [32, 128], strides = [1, 1]} : vector<128x128xf32> to vector<32x128xf32>
    %cst_113 = arith.constant dense<0.000000e+00> : vector<16x128xf32>
    %125 = tpu.matmul %123, %124, %cst_113 {dimension_numbers = #tpu.dot_dimension_numbers<[1], [0], [0], [1], [0, 0, 1, 1], [], []>} : vector<16x32xf32>, vector<32x128xf32>, vector<16x128xf32> -> vector<16x128xf32>
    %126 = arith.addf %121, %125 : vector<16x128xf32>
    %127 = vector.extract_strided_slice %114 {offsets = [0, 2, 0], sizes = [2, 8, 32], strides = [1, 1, 1]} : vector<2x11x32xf32> to vector<2x8x32xf32>
    %128 = vector.shape_cast %127 : vector<2x8x32xf32> to vector<16x32xf32>
    %129 = vector.extract_strided_slice %115 {offsets = [64, 0], sizes = [32, 128], strides = [1, 1]} : vector<128x128xf32> to vector<32x128xf32>
    %cst_114 = arith.constant dense<0.000000e+00> : vector<16x128xf32>
    %130 = tpu.matmul %128, %129, %cst_114 {dimension_numbers = #tpu.dot_dimension_numbers<[1], [0], [0], [1], [0, 0, 1, 1], [], []>} : vector<16x32xf32>, vector<32x128xf32>, vector<16x128xf32> -> vector<16x128xf32>
    %131 = arith.addf %126, %130 : vector<16x128xf32>
    %132 = vector.extract_strided_slice %114 {offsets = [0, 3, 0], sizes = [2, 8, 32], strides = [1, 1, 1]} : vector<2x11x32xf32> to vector<2x8x32xf32>
    %133 = vector.shape_cast %132 : vector<2x8x32xf32> to vector<16x32xf32>
    %134 = vector.extract_strided_slice %115 {offsets = [96, 0], sizes = [32, 128], strides = [1, 1]} : vector<128x128xf32> to vector<32x128xf32>
    %cst_115 = arith.constant dense<0.000000e+00> : vector<16x128xf32>
    %135 = tpu.matmul %133, %134, %cst_115 {dimension_numbers = #tpu.dot_dimension_numbers<[1], [0], [0], [1], [0, 0, 1, 1], [], []>} : vector<16x32xf32>, vector<32x128xf32>, vector<16x128xf32> -> vector<16x128xf32>
    %136 = arith.addf %131, %135 : vector<16x128xf32>
    %c0_116 = arith.constant 0 : index
    %c0_117 = arith.constant 0 : index
    %137 = vector.load %arg3[%c0_116, %c0_117] : memref<1x128xf32, #tpu.memory_space<vmem>>, vector<1x128xf32>
    %138 = vector.broadcast %137 : vector<1x128xf32> to vector<16x128xf32>
    %139 = arith.addf %136, %138 : vector<16x128xf32>
    %140 = vector.shape_cast %139 : vector<16x128xf32> to vector<2x8x128xf32>
    %141 = vector.shape_cast %140 : vector<2x8x128xf32> to vector<2x8x1x128xf32>
    %142 = vector.shape_cast %140 : vector<2x8x128xf32> to vector<2x1x8x128xf32>
    %143 = vector.broadcast %141 : vector<2x8x1x128xf32> to vector<2x8x8x128xf32>
    %144 = vector.broadcast %142 : vector<2x1x8x128xf32> to vector<2x8x8x128xf32>
    %145 = arith.mulf %143, %144 : vector<2x8x8x128xf32>
    %146 = vector.shape_cast %145 : vector<2x8x8x128xf32> to vector<128x128xf32>
    %c0_118 = arith.constant 0 : index
    %c0_119 = arith.constant 0 : index
    %147 = vector.load %arg4[%c0_118, %c0_119] : memref<128x128xf32, #tpu.memory_space<vmem>>, vector<128x128xf32>
    %cst_120 = arith.constant dense<0.000000e+00> : vector<128x128xf32>
    %148 = tpu.matmul %146, %147, %cst_120 {dimension_numbers = #tpu.dot_dimension_numbers<[1], [0], [0], [1], [0, 0, 1, 1], [], []>} : vector<128x128xf32>, vector<128x128xf32>, vector<128x128xf32> -> vector<128x128xf32>
    %c0_121 = arith.constant 0 : index
    %c0_122 = arith.constant 0 : index
    %149 = vector.load %arg5[%c0_121, %c0_122] : memref<1x128xf32, #tpu.memory_space<vmem>>, vector<1x128xf32>
    %150 = vector.broadcast %149 : vector<1x128xf32> to vector<128x128xf32>
    %151 = arith.addf %148, %150 : vector<128x128xf32>
    %c0_123 = arith.constant 0 : index
    %c0_124 = arith.constant 0 : index
    %152 = vector.load %arg6[%c0_123, %c0_124] : memref<128x128xf32, #tpu.memory_space<vmem>>, vector<128x128xf32>
    tpu.vector_store %arg6[%c0_123, %c0_124], %151 {strides = array<i32>} : memref<128x128xf32, #tpu.memory_space<vmem>>, vector<128x128xf32>,
    return
  }
}

</mosaic_0001>

<llo_original>
// kernel: gtscnn_forward.1
$region0: #{gtscnn_forward.1}
  #allocation0 [shape = 'u32[]', space=smem, size = 0x4, offset = 0x4, fixed_abs, tag = 'smem constant byte address 0x4 - core index']
  #allocation1 [shape = 'u32[72,128]{1,0:T(1,128)}', space=vmem, size = 0x9000, scoped, tag = 'internal scratch']
  #allocation2 [shape = 'f32[2,11,32]{2,1,0:T(8,128)}', space=vmem, size = 0x4000, scoped, tag = 'scratch operand']
  %s0 = inlined_call_operand.vmem [shape: s32[2,8], index: 0, kind: input, shape index: {}]
  %s1 = inlined_call_operand.vmem [shape: f32[100,1,32], index: 1, kind: input, shape index: {}]
  %s2 = inlined_call_operand.vmem [shape: f32[128,128], index: 2, kind: input, shape index: {}]
  %s3 = inlined_call_operand.vmem [shape: f32[1,128], index: 3, kind: input, shape index: {}]
  %s4 = inlined_call_operand.hbm [shape: f32[128,128], index: 4, kind: input, shape index: {}]
  %s5 = inlined_call_operand.vmem [shape: f32[1,128], index: 5, kind: input, shape index: {}]
  %s6 = inlined_call_operand.vmem [shape: f32[128,128], index: 6, kind: output, shape index: {}]
  %s7 = sld [smem:[#allocation0]]
  $region42: #{gtscnn_forward.1} parent=0
    _
  %s9 = ssub.s32 1, %s7
  %s10 = scalar_select 0, %s9, %s7
  $region1: #{gtscnn_forward.1} parent=0
    #allocation3 [shape = 'u8[1024]{0}', space=smem, size = 0x400, scoped, tag = 'input window, operand 0, single buffered']
    #allocation4 [shape = 's32[1]{0}', space=sflag, size = 0x4, scoped, tag = 'scoped memory for gtscnn_forward.1']
    #allocation5 [shape = 's32[1]{0}', space=sflag, size = 0x4, scoped, tag = 'scoped memory for gtscnn_forward.1']
    #allocation6 [shape = 'u8[65536]{0}', space=vmem, size = 0x10000, scoped, tag = 'input window, operand 4, single buffered']
    %11 = vsyncpa [#allocation5], 0
    %12 = vsyncpa [#allocation4], 0
    // Predicated region
    $region2: #{gtscnn_forward.1} parent=1 // pred_check
      _
    $region3: #{gtscnn_forward.1} parent=1 // pred_check_branch
      %14 = sbr.rel (0) target = $region5
    $region4: #{gtscnn_forward.1} parent=1 // pred_region
      %16 = vsyncadd [#allocation5], 0
      %s18 = sshll.u32 %s0, 4
      %s19 = int_to_ptr.vmem [resolvable:$true] %s18
      %21 = dma.vmem_to_smem %s19, 32, [#allocation3], [#allocation5]
    $region5: #{gtscnn_forward.1} parent=1 // pred_fallthru
      _
    // Predicated region
    $region6: #{gtscnn_forward.1} parent=1 // pred_check
      _
    $region7: #{gtscnn_forward.1} parent=1 // pred_check_branch
      %23 = sbr.rel (0) target = $region9
    $region8: #{gtscnn_forward.1} parent=1 // pred_region
      _
    $region9: #{gtscnn_forward.1} parent=1 // pred_fallthru
      _
    // Predicated region
    $region10: #{gtscnn_forward.1} parent=1 // pred_check
      _
    $region11: #{gtscnn_forward.1} parent=1 // pred_check_branch
      %25 = sbr.rel (0) target = $region13
    $region12: #{gtscnn_forward.1} parent=1 // pred_region
      _
    $region13: #{gtscnn_forward.1} parent=1 // pred_fallthru
      _
    // Predicated region
    $region14: #{gtscnn_forward.1} parent=1 // pred_check
      _
    $region15: #{gtscnn_forward.1} parent=1 // pred_check_branch
      %27 = sbr.rel (0) target = $region17
    $region16: #{gtscnn_forward.1} parent=1 // pred_region
      _
    $region17: #{gtscnn_forward.1} parent=1 // pred_fallthru
      _
    // Predicated region
    $region18: #{gtscnn_forward.1} parent=1 // pred_check
      _
    $region19: #{gtscnn_forward.1} parent=1 // pred_check_branch
      %29 = sbr.rel (0) target = $region21
    $region20: #{gtscnn_forward.1} parent=1 // pred_region
      %31 = vsyncadd [#allocation4], 0
      %s32 = sshll.u32 %s4, 4
      %s33 = int_to_ptr.hbm [resolvable:$true] %s32
      %s34 = sshll.u32 [#allocation6], 4
      %s35 = int_to_ptr.vmem [resolvable:$true] %s34
      %40 = dma.hbm_to_vmem [thread:$0]  %s33, 2048, %s35, [#allocation4], 128, 128, 8
    $region21: #{gtscnn_forward.1} parent=1 // pred_fallthru
      _
    // Predicated region
    $region22: #{gtscnn_forward.1} parent=1 // pred_check
      _
    $region23: #{gtscnn_forward.1} parent=1 // pred_check_branch
      %42 = sbr.rel (0) target = $region25
    $region24: #{gtscnn_forward.1} parent=1 // pred_region
      _
    $region25: #{gtscnn_forward.1} parent=1 // pred_fallthru
      _
    // Predicated region
    $region26: #{gtscnn_forward.1} parent=1 // pred_check
      _
    $region27: #{gtscnn_forward.1} parent=1 // pred_check_branch
      %44 = sbr.rel (0) target = $region29
    $region28: #{gtscnn_forward.1} parent=1 // pred_region
      %46 = dma.done [#allocation5], 32
    $region29: #{gtscnn_forward.1} parent=1 // pred_fallthru
      _
    // Predicated region
    $region30: #{gtscnn_forward.1} parent=1 // pred_check
      _
    $region31: #{gtscnn_forward.1} parent=1 // pred_check_branch
      %48 = sbr.rel (0) target = $region33
    $region32: #{gtscnn_forward.1} parent=1 // pred_region
      %50 = dma.done [#allocation4], 2048
    $region33: #{gtscnn_forward.1} parent=1 // pred_fallthru
      _
    %51 = sfence
    %vm52 = vcmask 261120
    %53 = vst.msk [vmem:[#allocation2] sm:$0xff] %vm52, 0.0
    %vm54 = vcmask 256000
    %55 = vst.msk [vmem:[#allocation2 + $0x8] sm:$0x7] %vm54, 0.0
    %56 = vst.msk [vmem:[#allocation2 + $0x10] sm:$0xff] %vm52, 0.0
    %57 = vst.msk [vmem:[#allocation2 + $0x18] sm:$0x7] %vm54, 0.0
    %s58 = sld [smem:[#allocation3]]
    %s59 = scalar_lea.vmem %s1, %s58
    %v60 = vld [vmem:[%s59] sm:$0x1]
    %vm61 = vcmask 253952
    %62 = vst.msk [vmem:[#allocation2 + $0x1] sm:$0x1] %vm61, %v60
    %s63 = sld [smem:[#allocation3 + $0x1]]
    %s64 = scalar_lea.vmem %s1, %s63
    %v65 = vld [vmem:[%s64] sm:$0x1]
    %66 = vst.msk [vmem:[#allocation2 + $0x2] sm:$0x1] %vm61, %v65
    %s67 = sld [smem:[#allocation3 + $0x2]]
    %s68 = scalar_lea.vmem %s1, %s67
    %v69 = vld [vmem:[%s68] sm:$0x1]
    %70 = vst.msk [vmem:[#allocation2 + $0x3] sm:$0x1] %vm61, %v69
    %s71 = sld [smem:[#allocation3 + $0x3]]
    %s72 = scalar_lea.vmem %s1, %s71
    %v73 = vld [vmem:[%s72] sm:$0x1]
    %74 = vst.msk [vmem:[#allocation2 + $0x4] sm:$0x1] %vm61, %v73
    %s75 = sld [smem:[#allocation3 + $0x4]]
    %s76 = scalar_lea.vmem %s1, %s75
    %v77 = vld [vmem:[%s76] sm:$0x1]
    %78 = vst.msk [vmem:[#allocation2 + $0x5] sm:$0x1] %vm61, %v77
    %s79 = sld [smem:[#allocation3 + $0x5]]
    %s80 = scalar_lea.vmem %s1, %s79
    %v81 = vld [vmem:[%s80] sm:$0x1]
    %82 = vst.msk [vmem:[#allocation2 + $0x6] sm:$0x1] %vm61, %v81
    %s83 = sld [smem:[#allocation3 + $0x6]]
    %s84 = scalar_lea.vmem %s1, %s83
    %v85 = vld [vmem:[%s84] sm:$0x1]
    %86 = vst.msk [vmem:[#allocation2 + $0x7] sm:$0x1] %vm61, %v85
    %s87 = sld [smem:[#allocation3 + $0x7]]
    %s88 = scalar_lea.vmem %s1, %s87
    %v89 = vld [vmem:[%s88] sm:$0x1]
    %90 = vst.msk [vmem:[#allocation2 + $0x8] sm:$0x1] %vm61, %v89
    %s91 = sld [smem:[#allocation3 + $0x80]]
    %s92 = scalar_lea.vmem %s1, %s91
    %v93 = vld [vmem:[%s92] sm:$0x1]
    %s94 = scalar_lea.vmem [#allocation2], 16
    %95 = vst.msk [vmem:[%s94 + $0x1] sm:$0x1] %vm61, %v93
    %s96 = sld [smem:[#allocation3 + $0x81]]
    %s97 = scalar_lea.vmem %s1, %s96
    %v98 = vld [vmem:[%s97] sm:$0x1]
    %99 = vst.msk [vmem:[%s94 + $0x2] sm:$0x1] %vm61, %v98
    %s100 = sld [smem:[#allocation3 + $0x82]]
    %s101 = scalar_lea.vmem %s1, %s100
    %v102 = vld [vmem:[%s101] sm:$0x1]
    %103 = vst.msk [vmem:[%s94 + $0x3] sm:$0x1] %vm61, %v102
    %s104 = sld [smem:[#allocation3 + $0x83]]
    %s105 = scalar_lea.vmem %s1, %s104
    %v106 = vld [vmem:[%s105] sm:$0x1]
    %107 = vst.msk [vmem:[%s94 + $0x4] sm:$0x1] %vm61, %v106
    %s108 = sld [smem:[#allocation3 + $0x84]]
    %s109 = scalar_lea.vmem %s1, %s108
    %v110 = vld [vmem:[%s109] sm:$0x1]
    %111 = vst.msk [vmem:[%s94 + $0x5] sm:$0x1] %vm61, %v110
    %s112 = sld [smem:[#allocation3 + $0x85]]
    %s113 = scalar_lea.vmem %s1, %s112
    %v114 = vld [vmem:[%s113] sm:$0x1]
    %115 = vst.msk [vmem:[%s94 + $0x6] sm:$0x1] %vm61, %v114
    %s116 = sld [smem:[#allocation3 + $0x86]]
    %s117 = scalar_lea.vmem %s1, %s116
    %v118 = vld [vmem:[%s117] sm:$0x1]
    %119 = vst.msk [vmem:[%s94 + $0x7] sm:$0x1] %vm61, %v118
    %s120 = sld [smem:[#allocation3 + $0x87]]
    %s121 = scalar_lea.vmem %s1, %s120
    %v122 = vld [vmem:[%s121] sm:$0x1]
    %123 = vst.msk [vmem:[%s94 + $0x8] sm:$0x1] %vm61, %v122
    %v124 = vld [vmem:[#allocation2] sm:$0xff]
    %v125 = vld [vmem:[#allocation2 + $0x8] sm:$0x7]
    %v126 = vld [vmem:[#allocation2 + $0x10] sm:$0xff]
    %v127 = vld [vmem:[#allocation2 + $0x18] sm:$0x7]
    %v128 = vld [vmem:[%s2] sm:$0xff]
    %v129 = vld [vmem:[%s2 + $0x8] sm:$0xff]
    %v130 = vld [vmem:[%s2 + $0x10] sm:$0xff]
    %v131 = vld [vmem:[%s2 + $0x18] sm:$0xff]
    %v132 = vld [vmem:[%s2 + $0x20] sm:$0xff]
    %v133 = vld [vmem:[%s2 + $0x28] sm:$0xff]
    %v134 = vld [vmem:[%s2 + $0x30] sm:$0xff]
    %v135 = vld [vmem:[%s2 + $0x38] sm:$0xff]
    %v136 = vld [vmem:[%s2 + $0x40] sm:$0xff]
    %v137 = vld [vmem:[%s2 + $0x48] sm:$0xff]
    %v138 = vld [vmem:[%s2 + $0x50] sm:$0xff]
    %v139 = vld [vmem:[%s2 + $0x58] sm:$0xff]
    %v140 = vld [vmem:[%s2 + $0x60] sm:$0xff]
    %v141 = vld [vmem:[%s2 + $0x68] sm:$0xff]
    %v142 = vld [vmem:[%s2 + $0x70] sm:$0xff]
    %v143 = vld [vmem:[%s2 + $0x78] sm:$0xff]
    %vm148 = vcmask 1046528
    %v149 = vrot.slane %v124, 1
    %v150 = vrot.slane %v125, 1
    %v151 = vsel %vm148, %v149, %v150
    %v152 = vrot.slane %v126, 1
    %v153 = vrot.slane %v127, 1
    %v154 = vsel %vm148, %v152, %v153
    %v155 = vsel %vm52, %v151, 0
    %v157 = vsel %vm52, %v154, 0
    %159 = vmatpush.msra.mxu0 0.0
    %160 = vmatpush.msra.mxu0 0.0
    %161 = vmatpush.msra.mxu0 0.0
    %162 = vmatpush.msra.mxu0 0.0
    %163 = vmatpush.msra.mxu0 0.0
    %164 = vmatpush.msra.mxu0 0.0
    %165 = vmatpush.msra.mxu0 0.0
    %166 = vmatpush.msra.mxu0 0.0
    %167 = vmatpush.msra.mxu0 0.0
    %168 = vmatpush.msra.mxu0 0.0
    %169 = vmatpush.msra.mxu0 0.0
    %170 = vmatpush.msra.mxu0 0.0
    %171 = vmatpush.msra.mxu0 %v135
    %172 = vmatpush.msra.mxu0 %v134
    %173 = vmatpush.msra.mxu0 %v133
    %174 = vmatpush.msra.mxu0 %v132
    %175 = vmatmul.f32.gmra.mxu0 %v155
    %v176 = vpop.f32.mrf.mxu0
    %v177 = vadd.f32 0.0, %v176
    %178 = vmatmul.f32.gmra.mxu0 %v157
    %v179 = vpop.f32.mrf.mxu0
    %v180 = vadd.f32 0.0, %v179
    %181 = vdwg.mxu0
    %v182 = vsel %vm52, %v124, 0
    %v184 = vsel %vm52, %v126, 0
    %186 = vmatpush.msra.mxu0 0.0
    %187 = vmatpush.msra.mxu0 0.0
    %188 = vmatpush.msra.mxu0 0.0
    %189 = vmatpush.msra.mxu0 0.0
    %190 = vmatpush.msra.mxu0 0.0
    %191 = vmatpush.msra.mxu0 0.0
    %192 = vmatpush.msra.mxu0 0.0
    %193 = vmatpush.msra.mxu0 0.0
    %194 = vmatpush.msra.mxu0 0.0
    %195 = vmatpush.msra.mxu0 0.0
    %196 = vmatpush.msra.mxu0 0.0
    %197 = vmatpush.msra.mxu0 0.0
    %198 = vmatpush.msra.mxu0 %v131
    %199 = vmatpush.msra.mxu0 %v130
    %200 = vmatpush.msra.mxu0 %v129
    %201 = vmatpush.msra.mxu0 %v128
    %202 = vmatmul.f32.gmra.mxu0 %v182
    %v203 = vpop.f32.mrf.mxu0
    %v204 = vadd.f32 %v177, %v203
    %205 = vmatmul.f32.gmra.mxu0 %v184
    %v206 = vpop.f32.mrf.mxu0
    %v207 = vadd.f32 %v180, %v206
    %208 = vdwg.mxu0
    %vm209 = vcmask 1045504
    %v210 = vrot.slane %v124, 2
    %v211 = vrot.slane %v125, 2
    %v212 = vsel %vm209, %v210, %v211
    %v213 = vrot.slane %v126, 2
    %v214 = vrot.slane %v127, 2
    %v215 = vsel %vm209, %v213, %v214
    %v216 = vsel %vm52, %v212, 0
    %v218 = vsel %vm52, %v215, 0
    %220 = vmatpush.msra.mxu0 0.0
    %221 = vmatpush.msra.mxu0 0.0
    %222 = vmatpush.msra.mxu0 0.0
    %223 = vmatpush.msra.mxu0 0.0
    %224 = vmatpush.msra.mxu0 0.0
    %225 = vmatpush.msra.mxu0 0.0
    %226 = vmatpush.msra.mxu0 0.0
    %227 = vmatpush.msra.mxu0 0.0
    %228 = vmatpush.msra.mxu0 0.0
    %229 = vmatpush.msra.mxu0 0.0
    %230 = vmatpush.msra.mxu0 0.0
    %231 = vmatpush.msra.mxu0 0.0
    %232 = vmatpush.msra.mxu0 %v139
    %233 = vmatpush.msra.mxu0 %v138
    %234 = vmatpush.msra.mxu0 %v137
    %235 = vmatpush.msra.mxu0 %v136
    %236 = vmatmul.f32.gmra.mxu0 %v216
    %v237 = vpop.f32.mrf.mxu0
    %v238 = vadd.f32 0.0, %v237
    %239 = vmatmul.f32.gmra.mxu0 %v218
    %v240 = vpop.f32.mrf.mxu0
    %v241 = vadd.f32 0.0, %v240
    %242 = vdwg.mxu0
    %v243 = vadd.f32 %v204, %v238
    %v244 = vadd.f32 %v207, %v241
    %vm245 = vcmask 1044480
    %v246 = vrot.slane %v124, 3
    %v247 = vrot.slane %v125, 3
    %v248 = vsel %vm245, %v246, %v247
    %v249 = vrot.slane %v126, 3
    %v250 = vrot.slane %v127, 3
    %v251 = vsel %vm245, %v249, %v250
    %v252 = vsel %vm52, %v248, 0
    %v254 = vsel %vm52, %v251, 0
    %256 = vmatpush.msra.mxu0 0.0
    %257 = vmatpush.msra.mxu0 0.0
    %258 = vmatpush.msra.mxu0 0.0
    %259 = vmatpush.msra.mxu0 0.0
    %260 = vmatpush.msra.mxu0 0.0
    %261 = vmatpush.msra.mxu0 0.0
    %262 = vmatpush.msra.mxu0 0.0
    %263 = vmatpush.msra.mxu0 0.0
    %264 = vmatpush.msra.mxu0 0.0
    %265 = vmatpush.msra.mxu0 0.0
    %266 = vmatpush.msra.mxu0 0.0
    %267 = vmatpush.msra.mxu0 0.0
    %268 = vmatpush.msra.mxu0 %v143
    %269 = vmatpush.msra.mxu0 %v142
    %270 = vmatpush.msra.mxu0 %v141
    %271 = vmatpush.msra.mxu0 %v140
    %272 = vmatmul.f32.gmra.mxu0 %v252
    %v273 = vpop.f32.mrf.mxu0
    %v274 = vadd.f32 0.0, %v273
    %275 = vmatmul.f32.gmra.mxu0 %v254
    %v276 = vpop.f32.mrf.mxu0
    %v277 = vadd.f32 0.0, %v276
    %278 = vdwg.mxu0
    %v279 = vadd.f32 %v243, %v274
    %v280 = vadd.f32 %v244, %v277
    %v281 = vld [vmem:[%s3] sm:$0x1]
    %v283 = vperm.slane %v281, 0
    %v285 = vadd.f32 %v279, %v283
    %v286 = vadd.f32 %v280, %v283
    %v289 = vrot.slane %v285, 1
    %v290 = vrot.slane %v285, 2
    %v291 = vrot.slane %v285, 3
    %v292 = vrot.slane %v285, 4
    %v293 = vrot.slane %v285, 5
    %v294 = vrot.slane %v285, 6
    %v295 = vrot.slane %v285, 7
    %v296 = vrot.slane %v286, 1
    %v297 = vrot.slane %v286, 2
    %v298 = vrot.slane %v286, 3
    %v299 = vrot.slane %v286, 4
    %v300 = vrot.slane %v286, 5
    %v301 = vrot.slane %v286, 6
    %v302 = vrot.slane %v286, 7
    %v303 = vperm.slane %v285, 0
    %v304 = vperm.slane %v289, 0
    %v305 = vperm.slane %v290, 0
    %v306 = vperm.slane %v291, 0
    %v307 = vperm.slane %v292, 0
    %v308 = vperm.slane %v293, 0
    %v309 = vperm.slane %v294, 0
    %v310 = vperm.slane %v295, 0
    %v311 = vperm.slane %v286, 0
    %v312 = vperm.slane %v296, 0
    %v313 = vperm.slane %v297, 0
    %v314 = vperm.slane %v298, 0
    %v315 = vperm.slane %v299, 0
    %v316 = vperm.slane %v300, 0
    %v317 = vperm.slane %v301, 0
    %v318 = vperm.slane %v302, 0
    %v335 = vmul.f32 %v303, %v285
    %v336 = vmul.f32 %v304, %v285
    %v337 = vmul.f32 %v305, %v285
    %v338 = vmul.f32 %v306, %v285
    %v339 = vmul.f32 %v307, %v285
    %v340 = vmul.f32 %v308, %v285
    %v341 = vmul.f32 %v309, %v285
    %v342 = vmul.f32 %v310, %v285
    %v343 = vmul.f32 %v311, %v286
    %v344 = vmul.f32 %v312, %v286
    %v345 = vmul.f32 %v313, %v286
    %v346 = vmul.f32 %v314, %v286
    %v347 = vmul.f32 %v315, %v286
    %v348 = vmul.f32 %v316, %v286
    %v349 = vmul.f32 %v317, %v286
    %v350 = vmul.f32 %v318, %v286
    %v351 = vld [vmem:[#allocation6] sm:$0xff]
    %v352 = vld [vmem:[#allocation6 + $0x8] sm:$0xff]
    %v353 = vld [vmem:[#allocation6 + $0x10] sm:$0xff]
    %v354 = vld [vmem:[#allocation6 + $0x18] sm:$0xff]
    %v355 = vld [vmem:[#allocation6 + $0x20] sm:$0xff]
    %v356 = vld [vmem:[#allocation6 + $0x28] sm:$0xff]
    %v357 = vld [vmem:[#allocation6 + $0x30] sm:$0xff]
    %v358 = vld [vmem:[#allocation6 + $0x38] sm:$0xff]
    %v359 = vld [vmem:[#allocation6 + $0x40] sm:$0xff]
    %v360 = vld [vmem:[#allocation6 + $0x48] sm:$0xff]
    %v361 = vld [vmem:[#allocation6 + $0x50] sm:$0xff]
    %v362 = vld [vmem:[#allocation6 + $0x58] sm:$0xff]
    %v363 = vld [vmem:[#allocation6 + $0x60] sm:$0xff]
    %v364 = vld [vmem:[#allocation6 + $0x68] sm:$0xff]
    %v365 = vld [vmem:[#allocation6 + $0x70] sm:$0xff]
    %v366 = vld [vmem:[#allocation6 + $0x78] sm:$0xff]
    %v367 = vld [vmem:[%s5] sm:$0x1]
    %v369 = vperm.slane %v367, 0
    %371 = vmatpush.msra.mxu0 %v366
    %372 = vmatpush.msra.mxu0 %v365
    %373 = vmatpush.msra.mxu0 %v364
    %374 = vmatpush.msra.mxu0 %v363
    %375 = vmatpush.msra.mxu0 %v362
    %376 = vmatpush.msra.mxu0 %v361
    %377 = vmatpush.msra.mxu0 %v360
    %378 = vmatpush.msra.mxu0 %v359
    %379 = vmatpush.msra.mxu0 %v358
    %380 = vmatpush.msra.mxu0 %v357
    %381 = vmatpush.msra.mxu0 %v356
    %382 = vmatpush.msra.mxu0 %v355
    %383 = vmatpush.msra.mxu0 %v354
    %384 = vmatpush.msra.mxu0 %v353
    %385 = vmatpush.msra.mxu0 %v352
    %386 = vmatpush.msra.mxu0 %v351
    %387 = vmatmul.f32.gmra.mxu0 %v335
    %v388 = vpop.f32.mrf.mxu0
    %v389 = vadd.f32 %v369, %v388
    %390 = vmatmul.f32.gmra.mxu0 %v336
    %v391 = vpop.f32.mrf.mxu0
    %v392 = vadd.f32 %v369, %v391
    %393 = vmatmul.f32.gmra.mxu0 %v337
    %v394 = vpop.f32.mrf.mxu0
    %v395 = vadd.f32 %v369, %v394
    %396 = vmatmul.f32.gmra.mxu0 %v338
    %v397 = vpop.f32.mrf.mxu0
    %v398 = vadd.f32 %v369, %v397
    %399 = vmatmul.f32.gmra.mxu0 %v339
    %v400 = vpop.f32.mrf.mxu0
    %v401 = vadd.f32 %v369, %v400
    %402 = vmatmul.f32.gmra.mxu0 %v340
    %v403 = vpop.f32.mrf.mxu0
    %v404 = vadd.f32 %v369, %v403
    %405 = vmatmul.f32.gmra.mxu0 %v341
    %v406 = vpop.f32.mrf.mxu0
    %v407 = vadd.f32 %v369, %v406
    %408 = vmatmul.f32.gmra.mxu0 %v342
    %v409 = vpop.f32.mrf.mxu0
    %v410 = vadd.f32 %v369, %v409
    %411 = vmatmul.f32.gmra.mxu0 %v343
    %v412 = vpop.f32.mrf.mxu0
    %v413 = vadd.f32 %v369, %v412
    %414 = vmatmul.f32.gmra.mxu0 %v344
    %v415 = vpop.f32.mrf.mxu0
    %v416 = vadd.f32 %v369, %v415
    %417 = vmatmul.f32.gmra.mxu0 %v345
    %v418 = vpop.f32.mrf.mxu0
    %v419 = vadd.f32 %v369, %v418
    %420 = vmatmul.f32.gmra.mxu0 %v346
    %v421 = vpop.f32.mrf.mxu0
    %v422 = vadd.f32 %v369, %v421
    %423 = vmatmul.f32.gmra.mxu0 %v347
    %v424 = vpop.f32.mrf.mxu0
    %v425 = vadd.f32 %v369, %v424
    %426 = vmatmul.f32.gmra.mxu0 %v348
    %v427 = vpop.f32.mrf.mxu0
    %v428 = vadd.f32 %v369, %v427
    %429 = vmatmul.f32.gmra.mxu0 %v349
    %v430 = vpop.f32.mrf.mxu0
    %v431 = vadd.f32 %v369, %v430
    %432 = vmatmul.f32.gmra.mxu0 %v350
    %v433 = vpop.f32.mrf.mxu0
    %v434 = vadd.f32 %v369, %v433
    %435 = vdwg.mxu0
    %436 = vst [vmem:[%s6] sm:$0xff] %v389
    %437 = vst [vmem:[%s6 + $0x8] sm:$0xff] %v392
    %438 = vst [vmem:[%s6 + $0x10] sm:$0xff] %v395
    %439 = vst [vmem:[%s6 + $0x18] sm:$0xff] %v398
    %440 = vst [vmem:[%s6 + $0x20] sm:$0xff] %v401
    %441 = vst [vmem:[%s6 + $0x28] sm:$0xff] %v404
    %442 = vst [vmem:[%s6 + $0x30] sm:$0xff] %v407
    %443 = vst [vmem:[%s6 + $0x38] sm:$0xff] %v410
    %444 = vst [vmem:[%s6 + $0x40] sm:$0xff] %v413
    %445 = vst [vmem:[%s6 + $0x48] sm:$0xff] %v416
    %446 = vst [vmem:[%s6 + $0x50] sm:$0xff] %v419
    %447 = vst [vmem:[%s6 + $0x58] sm:$0xff] %v422
    %448 = vst [vmem:[%s6 + $0x60] sm:$0xff] %v425
    %449 = vst [vmem:[%s6 + $0x68] sm:$0xff] %v428
    %450 = vst [vmem:[%s6 + $0x70] sm:$0xff] %v431
    %451 = vst [vmem:[%s6 + $0x78] sm:$0xff] %v434
    // Predicated region
    $region34: #{gtscnn_forward.1} parent=1 // pred_check
      _
    $region35: #{gtscnn_forward.1} parent=1 // pred_check_branch
      %453 = sbr.rel (0) target = $region37
    $region36: #{gtscnn_forward.1} parent=1 // pred_region
      _
    $region37: #{gtscnn_forward.1} parent=1 // pred_fallthru
      _
    // Predicated region
    $region38: #{gtscnn_forward.1} parent=1 // pred_check
      _
    $region39: #{gtscnn_forward.1} parent=1 // pred_check_branch
      %455 = sbr.rel (0) target = $region41
    $region40: #{gtscnn_forward.1} parent=1 // pred_region
      _
    $region41: #{gtscnn_forward.1} parent=1 // pred_fallthru
      _
    %456 = vsyncpa [#allocation4], 1
    %457 = vsyncpa [#allocation5], 1

</llo_original>
